<compile_context>
chip_gen: v6e
topology: v6e:2x2x1
jax: 0.10.0
libtpu: 0.0.40
codegen_flags: <defaults>
</compile_context>

<pallas_src>
import jax
import jax.numpy as jnp
from jax.experimental import pallas as pl
from jax.experimental.pallas import tpu as pltpu


def critic_kernel(xt_ref, w1_ref, b1_ref, w2_ref, b2_ref, w3_ref, b3_ref,
                  o_ref):
    # xt_ref: (F, TM)  -- batch on lanes.
    xt = xt_ref[...]

    # Layer 1: (H, F) @ (F, TM) -> (H, TM), f32 accumulate on the MXU.
    h1 = jnp.dot(w1_ref[...], xt, preferred_element_type=jnp.float32)
    h1 = jnp.maximum(h1 + b1_ref[...], 0.0)

    # Layer 2: (H, H) @ (H, TM) -> (H, TM).
    h2 = jnp.dot(w2_ref[...], h1, preferred_element_type=jnp.float32)
    h2 = jnp.maximum(h2 + b2_ref[...], 0.0)

    # Layer 3 (H -> 1): VPU multiply + sublane reduction instead of an N=1
    # matmul; w3/b3 already carry the folded 6000x `distence` scale.
    o = jnp.sum(h2 * w3_ref[...], axis=0, keepdims=True) + b3_ref[...]  # (1,TM)
    o_ref[...] = o.astype(o_ref.dtype)


def critic_forward(x, params, *, block_b=512):
    """x: (B, F).  params in PyTorch (out_features, in_features) layout with the
    6000x `distence` scale already folded into (w3, b3) via fold_distence()."""
    w1, b1, w2, b2, w3, b3 = params
    B, F = x.shape
    H = w1.shape[0]

    # Batch tile on the lane axis: full batch if small, else a 128-multiple.
    if B > block_b:
        tm = block_b
        g = pl.cdiv(B, tm)
    else:
        tm = B
        g = 1
    b_pad = g * tm
    if b_pad != B:
        x = jnp.pad(x, ((0, b_pad - B), (0, 0)))

    # Lane-dense layout plumbing only: batch on lanes.
    xt = x.T                                                  # (F, b_pad)

    flops = 2 * b_pad * (F * H + H * H + H)
    bytes_accessed = 4 * (b_pad * F + H * (F + H + 3) + 1 + b_pad)

    out = pl.pallas_call(
        critic_kernel,
        out_shape=jax.ShapeDtypeStruct((1, b_pad), jnp.float32),
        grid=(g,),
        in_specs=[
            pl.BlockSpec((F, tm), lambda i: (0, i)),          # x tile
            pl.BlockSpec((H, F), lambda i: (0, 0)),           # resident weights
            pl.BlockSpec((H, 1), lambda i: (0, 0)),
            pl.BlockSpec((H, H), lambda i: (0, 0)),
            pl.BlockSpec((H, 1), lambda i: (0, 0)),
            pl.BlockSpec((H, 1), lambda i: (0, 0)),
            pl.BlockSpec((1, 1), lambda i: (0, 0)),
        ],
        out_specs=pl.BlockSpec((1, tm), lambda i: (0, i)),    # lane-dense out
        compiler_params=pltpu.CompilerParams(
            dimension_semantics=("parallel",)),               # v7x: both TCs
        cost_estimate=pl.CostEstimate(
            flops=flops, transcendentals=0, bytes_accessed=bytes_accessed),
    )(xt, w1, b1, w2, b2, w3, b3)

    return out[0, :B][:, None]                                # (B, 1)


def init_params(key, in_dim, hidden):
    ks = jax.random.split(key, 6)
    w1 = jax.random.normal(ks[0], (hidden, in_dim), jnp.float32) * 0.1
    b1 = jax.random.normal(ks[1], (hidden, 1), jnp.float32) * 0.01
    w2 = jax.random.normal(ks[2], (hidden, hidden), jnp.float32) * 0.1
    b2 = jax.random.normal(ks[3], (hidden, 1), jnp.float32) * 0.01
    w3 = jax.random.normal(ks[4], (hidden, 1), jnp.float32) * 0.1
    b3 = jax.random.normal(ks[5], (1, 1), jnp.float32) * 0.01
    return (w1, b1, w2, b2, w3, b3)


def fold_distence(params, distence=6000.0):
    # One-time fold of the non-trainable scale into the last layer; removes a
    # per-call SMEM operand and a vector multiply from the kernel.
    w1, b1, w2, b2, w3, b3 = params
    return (w1, b1, w2, b2, w3 * distence, b3 * distence)


def reference_forward(x, params, distence=6000.0):
    w1, b1, w2, b2, w3, b3 = params
    h1 = jnp.maximum(x @ w1.T + b1.T, 0.0)
    h2 = jnp.maximum(h1 @ w2.T + b2.T, 0.0)
    return distence * (h2 @ w3 + b3)


if __name__ == "__main__":
    key = jax.random.PRNGKey(0)
    k_x, k_x2, k_p = jax.random.split(key, 3)

    batch, in_dim, hidden = 8, 32, 128
    distence = 6000.0

    params = init_params(k_p, in_dim, hidden)
    kernel_params = fold_distence(params, distence)

    # Small case: single batch tile, grid of 1.
    x = jax.random.normal(k_x, (batch, in_dim), jnp.float32)
    out = jax.block_until_ready(critic_forward(x, kernel_params))
    ref = reference_forward(x, params, distence)
    assert out.shape == (batch, 1)
    assert jnp.allclose(out, ref, rtol=1e-4, atol=1e-2), (out, ref)

    # Batched case: exercises the parallel batch grid + padding path.
    batch2 = 260
    x2 = jax.random.normal(k_x2, (batch2, in_dim), jnp.float32)
    out2 = jax.block_until_ready(critic_forward(x2, kernel_params, block_b=128))
    ref2 = reference_forward(x2, params, distence)
    assert out2.shape == (batch2, 1)
    assert jnp.allclose(out2, ref2, rtol=1e-4, atol=1e-2), (out2, ref2)

    print("KERNEL_OK")
</pallas_src>

<mosaic_0001>
module attributes {stable_mosaic.version = 11 : i64} {
  func.func @critic_kernel(%arg0: i32, %arg1: memref<32x8xf32, #tpu.memory_space<vmem>>, %arg2: memref<128x32xf32, #tpu.memory_space<vmem>>, %arg3: memref<128x1xf32, #tpu.memory_space<vmem>>, %arg4: memref<128x128xf32, #tpu.memory_space<vmem>>, %arg5: memref<128x1xf32, #tpu.memory_space<vmem>>, %arg6: memref<128x1xf32, #tpu.memory_space<vmem>>, %arg7: memref<1x1xf32, #tpu.memory_space<vmem>>, %arg8: memref<1x8xf32, #tpu.memory_space<vmem>>) attributes {dimension_semantics = [#tpu.dimension_semantics<parallel>], iteration_bounds = array<i64: 1>, scalar_prefetch = 0 : i64, scratch_operands = 0 : i64, tpu.core_type = #tpu.core_type<tc>, window_params = [{transform_indices = @transform_0, window_bounds = array<i64: 32, 8>}, {pipeline_mode = #tpu.pipeline_mode<synchronous>, transform_indices = @transform_1, window_bounds = array<i64: 128, 32>}, {pipeline_mode = #tpu.pipeline_mode<synchronous>, transform_indices = @transform_2, window_bounds = array<i64: 128, 1>}, {pipeline_mode = #tpu.pipeline_mode<synchronous>, transform_indices = @transform_3, window_bounds = array<i64: 128, 128>}, {pipeline_mode = #tpu.pipeline_mode<synchronous>, transform_indices = @transform_4, window_bounds = array<i64: 128, 1>}, {pipeline_mode = #tpu.pipeline_mode<synchronous>, transform_indices = @transform_5, window_bounds = array<i64: 128, 1>}, {pipeline_mode = #tpu.pipeline_mode<synchronous>, transform_indices = @transform_6, window_bounds = array<i64: 1, 1>}, {transform_indices = @transform_7, window_bounds = array<i64: 1, 8>}]} {
    %c0 = arith.constant 0 : index
    %c0_0 = arith.constant 0 : index
    %0 = vector.load %arg1[%c0, %c0_0] : memref<32x8xf32, #tpu.memory_space<vmem>>, vector<32x8xf32>
    %c0_1 = arith.constant 0 : index
    %c0_2 = arith.constant 0 : index
    %1 = vector.load %arg2[%c0_1, %c0_2] : memref<128x32xf32, #tpu.memory_space<vmem>>, vector<128x32xf32>
    %cst = arith.constant dense<0.000000e+00> : vector<128x8xf32>
    %2 = tpu.matmul %1, %0, %cst {dimension_numbers = #tpu.dot_dimension_numbers<[1], [0], [0], [1], [0, 0, 1, 1], [], []>} : vector<128x32xf32>, vector<32x8xf32>, vector<128x8xf32> -> vector<128x8xf32>
    %c0_3 = arith.constant 0 : index
    %c0_4 = arith.constant 0 : index
    %3 = vector.load %arg3[%c0_3, %c0_4] : memref<128x1xf32, #tpu.memory_space<vmem>>, vector<128x1xf32>
    %4 = vector.broadcast %3 : vector<128x1xf32> to vector<128x8xf32>
    %5 = arith.addf %2, %4 : vector<128x8xf32>
    %cst_5 = arith.constant 0.000000e+00 : f32
    %6 = vector.broadcast %cst_5 : f32 to vector<128x8xf32>
    %7 = arith.maximumf %5, %6 : vector<128x8xf32>
    %c0_6 = arith.constant 0 : index
    %c0_7 = arith.constant 0 : index
    %8 = vector.load %arg4[%c0_6, %c0_7] : memref<128x128xf32, #tpu.memory_space<vmem>>, vector<128x128xf32>
    %cst_8 = arith.constant dense<0.000000e+00> : vector<128x8xf32>
    %9 = tpu.matmul %8, %7, %cst_8 {dimension_numbers = #tpu.dot_dimension_numbers<[1], [0], [0], [1], [0, 0, 1, 1], [], []>} : vector<128x128xf32>, vector<128x8xf32>, vector<128x8xf32> -> vector<128x8xf32>
    %c0_9 = arith.constant 0 : index
    %c0_10 = arith.constant 0 : index
    %10 = vector.load %arg5[%c0_9, %c0_10] : memref<128x1xf32, #tpu.memory_space<vmem>>, vector<128x1xf32>
    %11 = vector.broadcast %10 : vector<128x1xf32> to vector<128x8xf32>
    %12 = arith.addf %9, %11 : vector<128x8xf32>
    %cst_11 = arith.constant 0.000000e+00 : f32
    %13 = vector.broadcast %cst_11 : f32 to vector<128x8xf32>
    %14 = arith.maximumf %12, %13 : vector<128x8xf32>
    %c0_12 = arith.constant 0 : index
    %c0_13 = arith.constant 0 : index
    %15 = vector.load %arg6[%c0_12, %c0_13] : memref<128x1xf32, #tpu.memory_space<vmem>>, vector<128x1xf32>
    %16 = vector.broadcast %15 : vector<128x1xf32> to vector<128x8xf32>
    %17 = arith.mulf %14, %16 : vector<128x8xf32>
    %cst_14 = arith.constant dense<0.000000e+00> : vector<8xf32>
    %18 = vector.multi_reduction <add>, %17, %cst_14 [0] : vector<128x8xf32> to vector<8xf32>
    %19 = vector.shape_cast %18 : vector<8xf32> to vector<1x8xf32>
    %c0_15 = arith.constant 0 : index
    %c0_16 = arith.constant 0 : index
    %20 = vector.load %arg7[%c0_15, %c0_16] : memref<1x1xf32, #tpu.memory_space<vmem>>, vector<1x1xf32>
    %21 = vector.broadcast %20 : vector<1x1xf32> to vector<1x8xf32>
    %22 = arith.addf %19, %21 : vector<1x8xf32>
    %c0_17 = arith.constant 0 : index
    %c0_18 = arith.constant 0 : index
    %23 = vector.load %arg8[%c0_17, %c0_18] : memref<1x8xf32, #tpu.memory_space<vmem>>, vector<1x8xf32>
    tpu.vector_store %arg8[%c0_17, %c0_18], %22 {strides = array<i32>} : memref<1x8xf32, #tpu.memory_space<vmem>>, vector<1x8xf32>,
    return
  }
  func.func @transform_0(%arg0: i32) -> (i32, i32) {
    %c0_i32 = arith.constant 0 : i32
    %c0_i32_0 = arith.constant 0 : i32
    return %c0_i32, %arg0 : i32, i32
  }
  func.func @transform_1(%arg0: i32) -> (i32, i32) {
    %c0_i32 = arith.constant 0 : i32
    %c0_i32_0 = arith.constant 0 : i32
    %c0_i32_1 = arith.constant 0 : i32
    return %c0_i32, %c0_i32_0 : i32, i32
  }
  func.func @transform_2(%arg0: i32) -> (i32, i32) {
    %c0_i32 = arith.constant 0 : i32
    %c0_i32_0 = arith.constant 0 : i32
    %c0_i32_1 = arith.constant 0 : i32
    return %c0_i32, %c0_i32_0 : i32, i32
  }
  func.func @transform_3(%arg0: i32) -> (i32, i32) {
    %c0_i32 = arith.constant 0 : i32
    %c0_i32_0 = arith.constant 0 : i32
    %c0_i32_1 = arith.constant 0 : i32
    return %c0_i32, %c0_i32_0 : i32, i32
  }
  func.func @transform_4(%arg0: i32) -> (i32, i32) {
    %c0_i32 = arith.constant 0 : i32
    %c0_i32_0 = arith.constant 0 : i32
    %c0_i32_1 = arith.constant 0 : i32
    return %c0_i32, %c0_i32_0 : i32, i32
  }
  func.func @transform_5(%arg0: i32) -> (i32, i32) {
    %c0_i32 = arith.constant 0 : i32
    %c0_i32_0 = arith.constant 0 : i32
    %c0_i32_1 = arith.constant 0 : i32
    return %c0_i32, %c0_i32_0 : i32, i32
  }
  func.func @transform_6(%arg0: i32) -> (i32, i32) {
    %c0_i32 = arith.constant 0 : i32
    %c0_i32_0 = arith.constant 0 : i32
    %c0_i32_1 = arith.constant 0 : i32
    return %c0_i32, %c0_i32_0 : i32, i32
  }
  func.func @transform_7(%arg0: i32) -> (i32, i32) {
    %c0_i32 = arith.constant 0 : i32
    %c0_i32_0 = arith.constant 0 : i32
    return %c0_i32, %arg0 : i32, i32
  }
}

</mosaic_0001>

<llo_original>
// kernel: tpu_custom_call.1
$region0: #{tpu_custom_call.1}
  #allocation0 [shape = 'u32[]', space=smem, size = 0x4, offset = 0x4, fixed_abs, tag = 'smem constant byte address 0x4 - core index']
  #allocation1 [shape = 'u32[144,128]{1,0:T(1,128)}', space=vmem, size = 0x12000, scoped, tag = 'internal scratch']
  #allocation2 [shape = 'f32[1,1]{1,0:T(1,128)S(1)}', space=vmem, size = 0x200, scoped, tag = 'scoped memory for tpu_custom_call.1']
  %s0 = inlined_call_operand.vmem [shape: f32[32,8], index: 0, kind: input, shape index: {}]
  %s1 = inlined_call_operand.vmem [shape: f32[128,32], index: 1, kind: input, shape index: {}]
  %s2 = inlined_call_operand.vmem [shape: f32[128,1], index: 2, kind: input, shape index: {}]
  %s3 = inlined_call_operand.vmem [shape: f32[128,128], index: 3, kind: input, shape index: {}]
  %s4 = inlined_call_operand.vmem [shape: f32[128,1], index: 4, kind: input, shape index: {}]
  %s5 = inlined_call_operand.vmem [shape: f32[128,1], index: 5, kind: input, shape index: {}]
  %s6 = inlined_call_operand.<no memory space> [shape: f32[1,1], index: 6, kind: input, shape index: {}]
  %s7 = inlined_call_operand.hbm [shape: f32[1,8], index: 7, kind: output, shape index: {}]
  %s8 = sld [smem:[#allocation0]]
  $region38: #{tpu_custom_call.1} parent=0
    _
  %s10 = ssub.s32 1, %s8
  %s11 = scalar_select 0, %s10, %s8
  %v12 = vstv %s6
  %13 = vst [vmem:[#allocation2] sm:$0x1] %v12
  $region1: #{tpu_custom_call.1} parent=0
    #allocation3 [shape = 'u8[512]{0}', space=vmem, size = 0x400, scoped, tag = 'output window, operand 0, single buffered']
    #allocation4 [shape = 's32[1]{0}', space=sflag, size = 0x4, scoped, tag = 'scoped memory for tpu_custom_call.1']
    %14 = vsyncpa [#allocation4], 0
    // Predicated region
    $region2: #{tpu_custom_call.1} parent=1 // pred_check
      _
    $region3: #{tpu_custom_call.1} parent=1 // pred_check_branch
      %16 = sbr.rel (0) target = $region5
    $region4: #{tpu_custom_call.1} parent=1 // pred_region
      _
    $region5: #{tpu_custom_call.1} parent=1 // pred_fallthru
      _
    // Predicated region
    $region6: #{tpu_custom_call.1} parent=1 // pred_check
      _
    $region7: #{tpu_custom_call.1} parent=1 // pred_check_branch
      %18 = sbr.rel (0) target = $region9
    $region8: #{tpu_custom_call.1} parent=1 // pred_region
      _
    $region9: #{tpu_custom_call.1} parent=1 // pred_fallthru
      _
    // Predicated region
    $region10: #{tpu_custom_call.1} parent=1 // pred_check
      _
    $region11: #{tpu_custom_call.1} parent=1 // pred_check_branch
      %20 = sbr.rel (0) target = $region13
    $region12: #{tpu_custom_call.1} parent=1 // pred_region
      _
    $region13: #{tpu_custom_call.1} parent=1 // pred_fallthru
      _
    // Predicated region
    $region14: #{tpu_custom_call.1} parent=1 // pred_check
      _
    $region15: #{tpu_custom_call.1} parent=1 // pred_check_branch
      %22 = sbr.rel (0) target = $region17
    $region16: #{tpu_custom_call.1} parent=1 // pred_region
      _
    $region17: #{tpu_custom_call.1} parent=1 // pred_fallthru
      _
    // Predicated region
    $region18: #{tpu_custom_call.1} parent=1 // pred_check
      _
    $region19: #{tpu_custom_call.1} parent=1 // pred_check_branch
      %24 = sbr.rel (0) target = $region21
    $region20: #{tpu_custom_call.1} parent=1 // pred_region
      _
    $region21: #{tpu_custom_call.1} parent=1 // pred_fallthru
      _
    // Predicated region
    $region22: #{tpu_custom_call.1} parent=1 // pred_check
      _
    $region23: #{tpu_custom_call.1} parent=1 // pred_check_branch
      %26 = sbr.rel (0) target = $region25
    $region24: #{tpu_custom_call.1} parent=1 // pred_region
      _
    $region25: #{tpu_custom_call.1} parent=1 // pred_fallthru
      _
    // Predicated region
    $region26: #{tpu_custom_call.1} parent=1 // pred_check
      _
    $region27: #{tpu_custom_call.1} parent=1 // pred_check_branch
      %28 = sbr.rel (0) target = $region29
    $region28: #{tpu_custom_call.1} parent=1 // pred_region
      _
    $region29: #{tpu_custom_call.1} parent=1 // pred_fallthru
      _
    %v29 = vld [vmem:[%s0] sm:$0xff]
    %v30 = vld [vmem:[%s0 + $0x8] sm:$0xff]
    %v31 = vld [vmem:[%s0 + $0x10] sm:$0xff]
    %v32 = vld [vmem:[%s0 + $0x18] sm:$0xff]
    %v33 = vld [vmem:[%s1] sm:$0xff]
    %v34 = vld [vmem:[%s1 + $0x8] sm:$0xff]
    %v35 = vld [vmem:[%s1 + $0x10] sm:$0xff]
    %v36 = vld [vmem:[%s1 + $0x18] sm:$0xff]
    %v37 = vld [vmem:[%s1 + $0x20] sm:$0xff]
    %v38 = vld [vmem:[%s1 + $0x28] sm:$0xff]
    %v39 = vld [vmem:[%s1 + $0x30] sm:$0xff]
    %v40 = vld [vmem:[%s1 + $0x38] sm:$0xff]
    %v41 = vld [vmem:[%s1 + $0x40] sm:$0xff]
    %v42 = vld [vmem:[%s1 + $0x48] sm:$0xff]
    %v43 = vld [vmem:[%s1 + $0x50] sm:$0xff]
    %v44 = vld [vmem:[%s1 + $0x58] sm:$0xff]
    %v45 = vld [vmem:[%s1 + $0x60] sm:$0xff]
    %v46 = vld [vmem:[%s1 + $0x68] sm:$0xff]
    %v47 = vld [vmem:[%s1 + $0x70] sm:$0xff]
    %v48 = vld [vmem:[%s1 + $0x78] sm:$0xff]
    %v49 = vld [vmem:[%s2] sm:$0xff]
    %v50 = vld [vmem:[%s2 + $0x8] sm:$0xff]
    %v51 = vld [vmem:[%s2 + $0x10] sm:$0xff]
    %v52 = vld [vmem:[%s2 + $0x18] sm:$0xff]
    %v53 = vld [vmem:[%s2 + $0x20] sm:$0xff]
    %v54 = vld [vmem:[%s2 + $0x28] sm:$0xff]
    %v55 = vld [vmem:[%s2 + $0x30] sm:$0xff]
    %v56 = vld [vmem:[%s2 + $0x38] sm:$0xff]
    %v57 = vld [vmem:[%s2 + $0x40] sm:$0xff]
    %v58 = vld [vmem:[%s2 + $0x48] sm:$0xff]
    %v59 = vld [vmem:[%s2 + $0x50] sm:$0xff]
    %v60 = vld [vmem:[%s2 + $0x58] sm:$0xff]
    %v61 = vld [vmem:[%s2 + $0x60] sm:$0xff]
    %v62 = vld [vmem:[%s2 + $0x68] sm:$0xff]
    %v63 = vld [vmem:[%s2 + $0x70] sm:$0xff]
    %v64 = vld [vmem:[%s2 + $0x78] sm:$0xff]
    %66 = vset.pattern.permute.xlu0 0
    %67 = vperm.xlu0 %66, %v49
    %v68 = vpop.permute.xlu0 %67
    %71 = vset.pattern.permute.xlu0 0
    %72 = vperm.xlu0 %71, %v50
    %v73 = vpop.permute.xlu0 %72
    %76 = vset.pattern.permute.xlu0 0
    %77 = vperm.xlu0 %76, %v51
    %v78 = vpop.permute.xlu0 %77
    %81 = vset.pattern.permute.xlu0 0
    %82 = vperm.xlu0 %81, %v52
    %v83 = vpop.permute.xlu0 %82
    %86 = vset.pattern.permute.xlu0 0
    %87 = vperm.xlu0 %86, %v53
    %v88 = vpop.permute.xlu0 %87
    %91 = vset.pattern.permute.xlu0 0
    %92 = vperm.xlu0 %91, %v54
    %v93 = vpop.permute.xlu0 %92
    %96 = vset.pattern.permute.xlu0 0
    %97 = vperm.xlu0 %96, %v55
    %v98 = vpop.permute.xlu0 %97
    %101 = vset.pattern.permute.xlu0 0
    %102 = vperm.xlu0 %101, %v56
    %v103 = vpop.permute.xlu0 %102
    %106 = vset.pattern.permute.xlu0 0
    %107 = vperm.xlu0 %106, %v57
    %v108 = vpop.permute.xlu0 %107
    %111 = vset.pattern.permute.xlu0 0
    %112 = vperm.xlu0 %111, %v58
    %v113 = vpop.permute.xlu0 %112
    %116 = vset.pattern.permute.xlu0 0
    %117 = vperm.xlu0 %116, %v59
    %v118 = vpop.permute.xlu0 %117
    %121 = vset.pattern.permute.xlu0 0
    %122 = vperm.xlu0 %121, %v60
    %v123 = vpop.permute.xlu0 %122
    %126 = vset.pattern.permute.xlu0 0
    %127 = vperm.xlu0 %126, %v61
    %v128 = vpop.permute.xlu0 %127
    %131 = vset.pattern.permute.xlu0 0
    %132 = vperm.xlu0 %131, %v62
    %v133 = vpop.permute.xlu0 %132
    %136 = vset.pattern.permute.xlu0 0
    %137 = vperm.xlu0 %136, %v63
    %v138 = vpop.permute.xlu0 %137
    %141 = vset.pattern.permute.xlu0 0
    %142 = vperm.xlu0 %141, %v64
    %v143 = vpop.permute.xlu0 %142
    %vm145 = vcmask 261120
    %v147 = vsel %vm145, %v33, 0
    %v150 = vsel %vm145, %v34, 0
    %v153 = vsel %vm145, %v35, 0
    %v156 = vsel %vm145, %v36, 0
    %v159 = vsel %vm145, %v37, 0
    %v162 = vsel %vm145, %v38, 0
    %v165 = vsel %vm145, %v39, 0
    %v168 = vsel %vm145, %v40, 0
    %v171 = vsel %vm145, %v41, 0
    %v174 = vsel %vm145, %v42, 0
    %v177 = vsel %vm145, %v43, 0
    %v180 = vsel %vm145, %v44, 0
    %v183 = vsel %vm145, %v45, 0
    %v186 = vsel %vm145, %v46, 0
    %v189 = vsel %vm145, %v47, 0
    %v192 = vsel %vm145, %v48, 0
    %194 = vmatprep.subr.mxu0 0.0
    %195 = vmatpush1.msra.mxu0 0.0
    %196 = vmatprep.subr.mxu0 0.0
    %197 = vmatpush1.msra.mxu0 0.0
    %198 = vmatprep.subr.mxu0 0.0
    %199 = vmatpush1.msra.mxu0 0.0
    %200 = vmatprep.subr.mxu0 0.0
    %201 = vmatpush1.msra.mxu0 0.0
    %202 = vmatprep.subr.mxu0 0.0
    %203 = vmatpush1.msra.mxu0 0.0
    %204 = vmatprep.subr.mxu0 0.0
    %205 = vmatpush1.msra.mxu0 0.0
    %206 = vmatprep.subr.mxu0 0.0
    %207 = vmatpush1.msra.mxu0 0.0
    %208 = vmatprep.subr.mxu0 0.0
    %209 = vmatpush1.msra.mxu0 0.0
    %210 = vmatprep.subr.mxu0 0.0
    %211 = vmatpush1.msra.mxu0 0.0
    %212 = vmatprep.subr.mxu0 0.0
    %213 = vmatpush1.msra.mxu0 0.0
    %214 = vmatprep.subr.mxu0 0.0
    %215 = vmatpush1.msra.mxu0 0.0
    %216 = vmatprep.subr.mxu0 0.0
    %217 = vmatpush1.msra.mxu0 0.0
    %218 = vmatprep.subr.mxu0 0.0
    %219 = vmatpush1.msra.mxu0 %v32
    %220 = vmatprep.subr.mxu0 0.0
    %221 = vmatpush1.msra.mxu0 %v31
    %222 = vmatprep.subr.mxu0 0.0
    %223 = vmatpush1.msra.mxu0 %v30
    %224 = vmatprep.subr.mxu0 0.0
    %225 = vmatpush1.msra.mxu0 %v29
    %226 = vmatprep.subr.mxu0 0.0
    %227 = vmatpush2.msra.mxu0 0.0
    %228 = vmatprep.subr.mxu0 0.0
    %229 = vmatpush2.msra.mxu0 0.0
    %230 = vmatprep.subr.mxu0 0.0
    %231 = vmatpush2.msra.mxu0 0.0
    %232 = vmatprep.subr.mxu0 0.0
    %233 = vmatpush2.msra.mxu0 0.0
    %234 = vmatprep.subr.mxu0 0.0
    %235 = vmatpush2.msra.mxu0 0.0
    %236 = vmatprep.subr.mxu0 0.0
    %237 = vmatpush2.msra.mxu0 0.0
    %238 = vmatprep.subr.mxu0 0.0
    %239 = vmatpush2.msra.mxu0 0.0
    %240 = vmatprep.subr.mxu0 0.0
    %241 = vmatpush2.msra.mxu0 0.0
    %242 = vmatprep.subr.mxu0 0.0
    %243 = vmatpush2.msra.mxu0 0.0
    %244 = vmatprep.subr.mxu0 0.0
    %245 = vmatpush2.msra.mxu0 0.0
    %246 = vmatprep.subr.mxu0 0.0
    %247 = vmatpush2.msra.mxu0 0.0
    %248 = vmatprep.subr.mxu0 0.0
    %249 = vmatpush2.msra.mxu0 0.0
    %250 = vmatprep.subr.mxu0 0.0
    %251 = vmatpush2.msra.mxu0 0.0
    %252 = vmatprep.subr.mxu0 0.0
    %253 = vmatpush2.msra.mxu0 0.0
    %254 = vmatprep.subr.mxu0 0.0
    %255 = vmatpush2.msra.mxu0 0.0
    %256 = vmatprep.subr.mxu0 0.0
    %257 = vmatpush2.msra.mxu0 0.0
    %258 = vmatprep.mubr.f32.mxu0 0.0
    %259 = vmatmul.mubr.f32.gmra.mxu0 %v147
    %v260 = vpop.f32.mrf.mxu0
    %v261 = vadd.f32 %v68, %v260
    %v262 = vpop.f32.mrf.mxu0
    %263 = vmatprep.mubr.f32.mxu0 0.0
    %264 = vmatmul.mubr.f32.gmra.mxu0 %v150
    %v265 = vpop.f32.mrf.mxu0
    %v266 = vadd.f32 %v73, %v265
    %v267 = vpop.f32.mrf.mxu0
    %268 = vmatprep.mubr.f32.mxu0 0.0
    %269 = vmatmul.mubr.f32.gmra.mxu0 %v153
    %v270 = vpop.f32.mrf.mxu0
    %v271 = vadd.f32 %v78, %v270
    %v272 = vpop.f32.mrf.mxu0
    %273 = vmatprep.mubr.f32.mxu0 0.0
    %274 = vmatmul.mubr.f32.gmra.mxu0 %v156
    %v275 = vpop.f32.mrf.mxu0
    %v276 = vadd.f32 %v83, %v275
    %v277 = vpop.f32.mrf.mxu0
    %278 = vmatprep.mubr.f32.mxu0 0.0
    %279 = vmatmul.mubr.f32.gmra.mxu0 %v159
    %v280 = vpop.f32.mrf.mxu0
    %v281 = vadd.f32 %v88, %v280
    %v282 = vpop.f32.mrf.mxu0
    %283 = vmatprep.mubr.f32.mxu0 0.0
    %284 = vmatmul.mubr.f32.gmra.mxu0 %v162
    %v285 = vpop.f32.mrf.mxu0
    %v286 = vadd.f32 %v93, %v285
    %v287 = vpop.f32.mrf.mxu0
    %288 = vmatprep.mubr.f32.mxu0 0.0
    %289 = vmatmul.mubr.f32.gmra.mxu0 %v165
    %v290 = vpop.f32.mrf.mxu0
    %v291 = vadd.f32 %v98, %v290
    %v292 = vpop.f32.mrf.mxu0
    %293 = vmatprep.mubr.f32.mxu0 0.0
    %294 = vmatmul.mubr.f32.gmra.mxu0 %v168
    %v295 = vpop.f32.mrf.mxu0
    %v296 = vadd.f32 %v103, %v295
    %v297 = vpop.f32.mrf.mxu0
    %298 = vmatprep.mubr.f32.mxu0 0.0
    %299 = vmatmul.mubr.f32.gmra.mxu0 %v171
    %v300 = vpop.f32.mrf.mxu0
    %v301 = vadd.f32 %v108, %v300
    %v302 = vpop.f32.mrf.mxu0
    %303 = vmatprep.mubr.f32.mxu0 0.0
    %304 = vmatmul.mubr.f32.gmra.mxu0 %v174
    %v305 = vpop.f32.mrf.mxu0
    %v306 = vadd.f32 %v113, %v305
    %v307 = vpop.f32.mrf.mxu0
    %308 = vmatprep.mubr.f32.mxu0 0.0
    %309 = vmatmul.mubr.f32.gmra.mxu0 %v177
    %v310 = vpop.f32.mrf.mxu0
    %v311 = vadd.f32 %v118, %v310
    %v312 = vpop.f32.mrf.mxu0
    %313 = vmatprep.mubr.f32.mxu0 0.0
    %314 = vmatmul.mubr.f32.gmra.mxu0 %v180
    %v315 = vpop.f32.mrf.mxu0
    %v316 = vadd.f32 %v123, %v315
    %v317 = vpop.f32.mrf.mxu0
    %318 = vmatprep.mubr.f32.mxu0 0.0
    %319 = vmatmul.mubr.f32.gmra.mxu0 %v183
    %v320 = vpop.f32.mrf.mxu0
    %v321 = vadd.f32 %v128, %v320
    %v322 = vpop.f32.mrf.mxu0
    %323 = vmatprep.mubr.f32.mxu0 0.0
    %324 = vmatmul.mubr.f32.gmra.mxu0 %v186
    %v325 = vpop.f32.mrf.mxu0
    %v326 = vadd.f32 %v133, %v325
    %v327 = vpop.f32.mrf.mxu0
    %328 = vmatprep.mubr.f32.mxu0 0.0
    %329 = vmatmul.mubr.f32.gmra.mxu0 %v189
    %v330 = vpop.f32.mrf.mxu0
    %v331 = vadd.f32 %v138, %v330
    %v332 = vpop.f32.mrf.mxu0
    %333 = vmatprep.mubr.f32.mxu0 0.0
    %334 = vmatmul.mubr.f32.gmra.mxu0 %v192
    %v335 = vpop.f32.mrf.mxu0
    %v336 = vadd.f32 %v143, %v335
    %v337 = vpop.f32.mrf.mxu0
    %338 = vdwg.mxu0
    %v339 = vmax.f32 %v261, 0.0
    %v340 = vmax.f32 %v266, 0.0
    %v341 = vmax.f32 %v271, 0.0
    %v342 = vmax.f32 %v276, 0.0
    %v343 = vmax.f32 %v281, 0.0
    %v344 = vmax.f32 %v286, 0.0
    %v345 = vmax.f32 %v291, 0.0
    %v346 = vmax.f32 %v296, 0.0
    %v347 = vmax.f32 %v301, 0.0
    %v348 = vmax.f32 %v306, 0.0
    %v349 = vmax.f32 %v311, 0.0
    %v350 = vmax.f32 %v316, 0.0
    %v351 = vmax.f32 %v321, 0.0
    %v352 = vmax.f32 %v326, 0.0
    %v353 = vmax.f32 %v331, 0.0
    %v354 = vmax.f32 %v336, 0.0
    %v355 = vld [vmem:[%s3] sm:$0xff]
    %v356 = vld [vmem:[%s3 + $0x8] sm:$0xff]
    %v357 = vld [vmem:[%s3 + $0x10] sm:$0xff]
    %v358 = vld [vmem:[%s3 + $0x18] sm:$0xff]
    %v359 = vld [vmem:[%s3 + $0x20] sm:$0xff]
    %v360 = vld [vmem:[%s3 + $0x28] sm:$0xff]
    %v361 = vld [vmem:[%s3 + $0x30] sm:$0xff]
    %v362 = vld [vmem:[%s3 + $0x38] sm:$0xff]
    %v363 = vld [vmem:[%s3 + $0x40] sm:$0xff]
    %v364 = vld [vmem:[%s3 + $0x48] sm:$0xff]
    %v365 = vld [vmem:[%s3 + $0x50] sm:$0xff]
    %v366 = vld [vmem:[%s3 + $0x58] sm:$0xff]
    %v367 = vld [vmem:[%s3 + $0x60] sm:$0xff]
    %v368 = vld [vmem:[%s3 + $0x68] sm:$0xff]
    %v369 = vld [vmem:[%s3 + $0x70] sm:$0xff]
    %v370 = vld [vmem:[%s3 + $0x78] sm:$0xff]
    %v371 = vld [vmem:[%s4] sm:$0xff]
    %v372 = vld [vmem:[%s4 + $0x8] sm:$0xff]
    %v373 = vld [vmem:[%s4 + $0x10] sm:$0xff]
    %v374 = vld [vmem:[%s4 + $0x18] sm:$0xff]
    %v375 = vld [vmem:[%s4 + $0x20] sm:$0xff]
    %v376 = vld [vmem:[%s4 + $0x28] sm:$0xff]
    %v377 = vld [vmem:[%s4 + $0x30] sm:$0xff]
    %v378 = vld [vmem:[%s4 + $0x38] sm:$0xff]
    %v379 = vld [vmem:[%s4 + $0x40] sm:$0xff]
    %v380 = vld [vmem:[%s4 + $0x48] sm:$0xff]
    %v381 = vld [vmem:[%s4 + $0x50] sm:$0xff]
    %v382 = vld [vmem:[%s4 + $0x58] sm:$0xff]
    %v383 = vld [vmem:[%s4 + $0x60] sm:$0xff]
    %v384 = vld [vmem:[%s4 + $0x68] sm:$0xff]
    %v385 = vld [vmem:[%s4 + $0x70] sm:$0xff]
    %v386 = vld [vmem:[%s4 + $0x78] sm:$0xff]
    %388 = vset.pattern.permute.xlu0 0
    %389 = vperm.xlu0 %388, %v371
    %v390 = vpop.permute.xlu0 %389
    %393 = vset.pattern.permute.xlu0 0
    %394 = vperm.xlu0 %393, %v372
    %v395 = vpop.permute.xlu0 %394
    %398 = vset.pattern.permute.xlu0 0
    %399 = vperm.xlu0 %398, %v373
    %v400 = vpop.permute.xlu0 %399
    %403 = vset.pattern.permute.xlu0 0
    %404 = vperm.xlu0 %403, %v374
    %v405 = vpop.permute.xlu0 %404
    %408 = vset.pattern.permute.xlu0 0
    %409 = vperm.xlu0 %408, %v375
    %v410 = vpop.permute.xlu0 %409
    %413 = vset.pattern.permute.xlu0 0
    %414 = vperm.xlu0 %413, %v376
    %v415 = vpop.permute.xlu0 %414
    %418 = vset.pattern.permute.xlu0 0
    %419 = vperm.xlu0 %418, %v377
    %v420 = vpop.permute.xlu0 %419
    %423 = vset.pattern.permute.xlu0 0
    %424 = vperm.xlu0 %423, %v378
    %v425 = vpop.permute.xlu0 %424
    %428 = vset.pattern.permute.xlu0 0
    %429 = vperm.xlu0 %428, %v379
    %v430 = vpop.permute.xlu0 %429
    %433 = vset.pattern.permute.xlu0 0
    %434 = vperm.xlu0 %433, %v380
    %v435 = vpop.permute.xlu0 %434
    %438 = vset.pattern.permute.xlu0 0
    %439 = vperm.xlu0 %438, %v381
    %v440 = vpop.permute.xlu0 %439
    %443 = vset.pattern.permute.xlu0 0
    %444 = vperm.xlu0 %443, %v382
    %v445 = vpop.permute.xlu0 %444
    %448 = vset.pattern.permute.xlu0 0
    %449 = vperm.xlu0 %448, %v383
    %v450 = vpop.permute.xlu0 %449
    %453 = vset.pattern.permute.xlu0 0
    %454 = vperm.xlu0 %453, %v384
    %v455 = vpop.permute.xlu0 %454
    %458 = vset.pattern.permute.xlu0 0
    %459 = vperm.xlu0 %458, %v385
    %v460 = vpop.permute.xlu0 %459
    %463 = vset.pattern.permute.xlu0 0
    %464 = vperm.xlu0 %463, %v386
    %v465 = vpop.permute.xlu0 %464
    %467 = vmatprep.subr.mxu0 0.0
    %468 = vmatpush1.msra.mxu0 %v354
    %469 = vmatprep.subr.mxu0 0.0
    %470 = vmatpush1.msra.mxu0 %v353
    %471 = vmatprep.subr.mxu0 0.0
    %472 = vmatpush1.msra.mxu0 %v352
    %473 = vmatprep.subr.mxu0 0.0
    %474 = vmatpush1.msra.mxu0 %v351
    %475 = vmatprep.subr.mxu0 0.0
    %476 = vmatpush1.msra.mxu0 %v350
    %477 = vmatprep.subr.mxu0 0.0
    %478 = vmatpush1.msra.mxu0 %v349
    %479 = vmatprep.subr.mxu0 0.0
    %480 = vmatpush1.msra.mxu0 %v348
    %481 = vmatprep.subr.mxu0 0.0
    %482 = vmatpush1.msra.mxu0 %v347
    %483 = vmatprep.subr.mxu0 0.0
    %484 = vmatpush1.msra.mxu0 %v346
    %485 = vmatprep.subr.mxu0 0.0
    %486 = vmatpush1.msra.mxu0 %v345
    %487 = vmatprep.subr.mxu0 0.0
    %488 = vmatpush1.msra.mxu0 %v344
    %489 = vmatprep.subr.mxu0 0.0
    %490 = vmatpush1.msra.mxu0 %v343
    %491 = vmatprep.subr.mxu0 0.0
    %492 = vmatpush1.msra.mxu0 %v342
    %493 = vmatprep.subr.mxu0 0.0
    %494 = vmatpush1.msra.mxu0 %v341
    %495 = vmatprep.subr.mxu0 0.0
    %496 = vmatpush1.msra.mxu0 %v340
    %497 = vmatprep.subr.mxu0 0.0
    %498 = vmatpush1.msra.mxu0 %v339
    %499 = vmatprep.subr.mxu0 0.0
    %500 = vmatpush2.msra.mxu0 0.0
    %501 = vmatprep.subr.mxu0 0.0
    %502 = vmatpush2.msra.mxu0 0.0
    %503 = vmatprep.subr.mxu0 0.0
    %504 = vmatpush2.msra.mxu0 0.0
    %505 = vmatprep.subr.mxu0 0.0
    %506 = vmatpush2.msra.mxu0 0.0
    %507 = vmatprep.subr.mxu0 0.0
    %508 = vmatpush2.msra.mxu0 0.0
    %509 = vmatprep.subr.mxu0 0.0
    %510 = vmatpush2.msra.mxu0 0.0
    %511 = vmatprep.subr.mxu0 0.0
    %512 = vmatpush2.msra.mxu0 0.0
    %513 = vmatprep.subr.mxu0 0.0
    %514 = vmatpush2.msra.mxu0 0.0
    %515 = vmatprep.subr.mxu0 0.0
    %516 = vmatpush2.msra.mxu0 0.0
    %517 = vmatprep.subr.mxu0 0.0
    %518 = vmatpush2.msra.mxu0 0.0
    %519 = vmatprep.subr.mxu0 0.0
    %520 = vmatpush2.msra.mxu0 0.0
    %521 = vmatprep.subr.mxu0 0.0
    %522 = vmatpush2.msra.mxu0 0.0
    %523 = vmatprep.subr.mxu0 0.0
    %524 = vmatpush2.msra.mxu0 0.0
    %525 = vmatprep.subr.mxu0 0.0
    %526 = vmatpush2.msra.mxu0 0.0
    %527 = vmatprep.subr.mxu0 0.0
    %528 = vmatpush2.msra.mxu0 0.0
    %529 = vmatprep.subr.mxu0 0.0
    %530 = vmatpush2.msra.mxu0 0.0
    %531 = vmatprep.mubr.f32.mxu0 0.0
    %532 = vmatmul.mubr.f32.gmra.mxu0 %v355
    %v533 = vpop.f32.mrf.mxu0
    %v534 = vadd.f32 %v390, %v533
    %v535 = vpop.f32.mrf.mxu0
    %536 = vmatprep.mubr.f32.mxu0 0.0
    %537 = vmatmul.mubr.f32.gmra.mxu0 %v356
    %v538 = vpop.f32.mrf.mxu0
    %v539 = vadd.f32 %v395, %v538
    %v540 = vpop.f32.mrf.mxu0
    %541 = vmatprep.mubr.f32.mxu0 0.0
    %542 = vmatmul.mubr.f32.gmra.mxu0 %v357
    %v543 = vpop.f32.mrf.mxu0
    %v544 = vadd.f32 %v400, %v543
    %v545 = vpop.f32.mrf.mxu0
    %546 = vmatprep.mubr.f32.mxu0 0.0
    %547 = vmatmul.mubr.f32.gmra.mxu0 %v358
    %v548 = vpop.f32.mrf.mxu0
    %v549 = vadd.f32 %v405, %v548
    %v550 = vpop.f32.mrf.mxu0
    %551 = vmatprep.mubr.f32.mxu0 0.0
    %552 = vmatmul.mubr.f32.gmra.mxu0 %v359
    %v553 = vpop.f32.mrf.mxu0
    %v554 = vadd.f32 %v410, %v553
    %v555 = vpop.f32.mrf.mxu0
    %556 = vmatprep.mubr.f32.mxu0 0.0
    %557 = vmatmul.mubr.f32.gmra.mxu0 %v360
    %v558 = vpop.f32.mrf.mxu0
    %v559 = vadd.f32 %v415, %v558
    %v560 = vpop.f32.mrf.mxu0
    %561 = vmatprep.mubr.f32.mxu0 0.0
    %562 = vmatmul.mubr.f32.gmra.mxu0 %v361
    %v563 = vpop.f32.mrf.mxu0
    %v564 = vadd.f32 %v420, %v563
    %v565 = vpop.f32.mrf.mxu0
    %566 = vmatprep.mubr.f32.mxu0 0.0
    %567 = vmatmul.mubr.f32.gmra.mxu0 %v362
    %v568 = vpop.f32.mrf.mxu0
    %v569 = vadd.f32 %v425, %v568
    %v570 = vpop.f32.mrf.mxu0
    %571 = vmatprep.mubr.f32.mxu0 0.0
    %572 = vmatmul.mubr.f32.gmra.mxu0 %v363
    %v573 = vpop.f32.mrf.mxu0
    %v574 = vadd.f32 %v430, %v573
    %v575 = vpop.f32.mrf.mxu0
    %576 = vmatprep.mubr.f32.mxu0 0.0
    %577 = vmatmul.mubr.f32.gmra.mxu0 %v364
    %v578 = vpop.f32.mrf.mxu0
    %v579 = vadd.f32 %v435, %v578
    %v580 = vpop.f32.mrf.mxu0
    %581 = vmatprep.mubr.f32.mxu0 0.0
    %582 = vmatmul.mubr.f32.gmra.mxu0 %v365
    %v583 = vpop.f32.mrf.mxu0
    %v584 = vadd.f32 %v440, %v583
    %v585 = vpop.f32.mrf.mxu0
    %586 = vmatprep.mubr.f32.mxu0 0.0
    %587 = vmatmul.mubr.f32.gmra.mxu0 %v366
    %v588 = vpop.f32.mrf.mxu0
    %v589 = vadd.f32 %v445, %v588
    %v590 = vpop.f32.mrf.mxu0
    %591 = vmatprep.mubr.f32.mxu0 0.0
    %592 = vmatmul.mubr.f32.gmra.mxu0 %v367
    %v593 = vpop.f32.mrf.mxu0
    %v594 = vadd.f32 %v450, %v593
    %v595 = vpop.f32.mrf.mxu0
    %596 = vmatprep.mubr.f32.mxu0 0.0
    %597 = vmatmul.mubr.f32.gmra.mxu0 %v368
    %v598 = vpop.f32.mrf.mxu0
    %v599 = vadd.f32 %v455, %v598
    %v600 = vpop.f32.mrf.mxu0
    %601 = vmatprep.mubr.f32.mxu0 0.0
    %602 = vmatmul.mubr.f32.gmra.mxu0 %v369
    %v603 = vpop.f32.mrf.mxu0
    %v604 = vadd.f32 %v460, %v603
    %v605 = vpop.f32.mrf.mxu0
    %606 = vmatprep.mubr.f32.mxu0 0.0
    %607 = vmatmul.mubr.f32.gmra.mxu0 %v370
    %v608 = vpop.f32.mrf.mxu0
    %v609 = vadd.f32 %v465, %v608
    %v610 = vpop.f32.mrf.mxu0
    %611 = vdwg.mxu0
    %v612 = vmax.f32 %v534, 0.0
    %v613 = vmax.f32 %v539, 0.0
    %v614 = vmax.f32 %v544, 0.0
    %v615 = vmax.f32 %v549, 0.0
    %v616 = vmax.f32 %v554, 0.0
    %v617 = vmax.f32 %v559, 0.0
    %v618 = vmax.f32 %v564, 0.0
    %v619 = vmax.f32 %v569, 0.0
    %v620 = vmax.f32 %v574, 0.0
    %v621 = vmax.f32 %v579, 0.0
    %v622 = vmax.f32 %v584, 0.0
    %v623 = vmax.f32 %v589, 0.0
    %v624 = vmax.f32 %v594, 0.0
    %v625 = vmax.f32 %v599, 0.0
    %v626 = vmax.f32 %v604, 0.0
    %v627 = vmax.f32 %v609, 0.0
    %v628 = vld [vmem:[%s5] sm:$0xff]
    %v629 = vld [vmem:[%s5 + $0x8] sm:$0xff]
    %v630 = vld [vmem:[%s5 + $0x10] sm:$0xff]
    %v631 = vld [vmem:[%s5 + $0x18] sm:$0xff]
    %v632 = vld [vmem:[%s5 + $0x20] sm:$0xff]
    %v633 = vld [vmem:[%s5 + $0x28] sm:$0xff]
    %v634 = vld [vmem:[%s5 + $0x30] sm:$0xff]
    %v635 = vld [vmem:[%s5 + $0x38] sm:$0xff]
    %v636 = vld [vmem:[%s5 + $0x40] sm:$0xff]
    %v637 = vld [vmem:[%s5 + $0x48] sm:$0xff]
    %v638 = vld [vmem:[%s5 + $0x50] sm:$0xff]
    %v639 = vld [vmem:[%s5 + $0x58] sm:$0xff]
    %v640 = vld [vmem:[%s5 + $0x60] sm:$0xff]
    %v641 = vld [vmem:[%s5 + $0x68] sm:$0xff]
    %v642 = vld [vmem:[%s5 + $0x70] sm:$0xff]
    %v643 = vld [vmem:[%s5 + $0x78] sm:$0xff]
    %645 = vset.pattern.permute.xlu0 0
    %646 = vperm.xlu0 %645, %v628
    %v647 = vpop.permute.xlu0 %646
    %650 = vset.pattern.permute.xlu0 0
    %651 = vperm.xlu0 %650, %v629
    %v652 = vpop.permute.xlu0 %651
    %655 = vset.pattern.permute.xlu0 0
    %656 = vperm.xlu0 %655, %v630
    %v657 = vpop.permute.xlu0 %656
    %660 = vset.pattern.permute.xlu0 0
    %661 = vperm.xlu0 %660, %v631
    %v662 = vpop.permute.xlu0 %661
    %665 = vset.pattern.permute.xlu0 0
    %666 = vperm.xlu0 %665, %v632
    %v667 = vpop.permute.xlu0 %666
    %670 = vset.pattern.permute.xlu0 0
    %671 = vperm.xlu0 %670, %v633
    %v672 = vpop.permute.xlu0 %671
    %675 = vset.pattern.permute.xlu0 0
    %676 = vperm.xlu0 %675, %v634
    %v677 = vpop.permute.xlu0 %676
    %680 = vset.pattern.permute.xlu0 0
    %681 = vperm.xlu0 %680, %v635
    %v682 = vpop.permute.xlu0 %681
    %685 = vset.pattern.permute.xlu0 0
    %686 = vperm.xlu0 %685, %v636
    %v687 = vpop.permute.xlu0 %686
    %690 = vset.pattern.permute.xlu0 0
    %691 = vperm.xlu0 %690, %v637
    %v692 = vpop.permute.xlu0 %691
    %695 = vset.pattern.permute.xlu0 0
    %696 = vperm.xlu0 %695, %v638
    %v697 = vpop.permute.xlu0 %696
    %700 = vset.pattern.permute.xlu0 0
    %701 = vperm.xlu0 %700, %v639
    %v702 = vpop.permute.xlu0 %701
    %705 = vset.pattern.permute.xlu0 0
    %706 = vperm.xlu0 %705, %v640
    %v707 = vpop.permute.xlu0 %706
    %710 = vset.pattern.permute.xlu0 0
    %711 = vperm.xlu0 %710, %v641
    %v712 = vpop.permute.xlu0 %711
    %715 = vset.pattern.permute.xlu0 0
    %716 = vperm.xlu0 %715, %v642
    %v717 = vpop.permute.xlu0 %716
    %720 = vset.pattern.permute.xlu0 0
    %721 = vperm.xlu0 %720, %v643
    %v722 = vpop.permute.xlu0 %721
    %v724 = vmul.f32 %v612, %v647
    %v725 = vmul.f32 %v613, %v652
    %v726 = vmul.f32 %v614, %v657
    %v727 = vmul.f32 %v615, %v662
    %v728 = vmul.f32 %v616, %v667
    %v729 = vmul.f32 %v617, %v672
    %v730 = vmul.f32 %v618, %v677
    %v731 = vmul.f32 %v619, %v682
    %v732 = vmul.f32 %v620, %v687
    %v733 = vmul.f32 %v621, %v692
    %v734 = vmul.f32 %v622, %v697
    %v735 = vmul.f32 %v623, %v702
    %v736 = vmul.f32 %v624, %v707
    %v737 = vmul.f32 %v625, %v712
    %v738 = vmul.f32 %v626, %v717
    %v739 = vmul.f32 %v627, %v722
    %vm740 = vcmask 64512
    %v741 = vsel %vm740, %v724, 0.0
    %v742 = vsel %vm740, %v725, 0.0
    %v743 = vadd.f32 %v741, %v742
    %v744 = vsel %vm740, %v726, 0.0
    %v745 = vadd.f32 %v743, %v744
    %v746 = vsel %vm740, %v727, 0.0
    %v747 = vadd.f32 %v745, %v746
    %v748 = vsel %vm740, %v728, 0.0
    %v749 = vadd.f32 %v747, %v748
    %v750 = vsel %vm740, %v729, 0.0
    %v751 = vadd.f32 %v749, %v750
    %v752 = vsel %vm740, %v730, 0.0
    %v753 = vadd.f32 %v751, %v752
    %v754 = vsel %vm740, %v731, 0.0
    %v755 = vadd.f32 %v753, %v754
    %v756 = vsel %vm740, %v732, 0.0
    %v757 = vadd.f32 %v755, %v756
    %v758 = vsel %vm740, %v733, 0.0
    %v759 = vadd.f32 %v757, %v758
    %v760 = vsel %vm740, %v734, 0.0
    %v761 = vadd.f32 %v759, %v760
    %v762 = vsel %vm740, %v735, 0.0
    %v763 = vadd.f32 %v761, %v762
    %v764 = vsel %vm740, %v736, 0.0
    %v765 = vadd.f32 %v763, %v764
    %v766 = vsel %vm740, %v737, 0.0
    %v767 = vadd.f32 %v765, %v766
    %v768 = vsel %vm740, %v738, 0.0
    %v769 = vadd.f32 %v767, %v768
    %v770 = vsel %vm740, %v739, 0.0
    %v771 = vadd.f32 %v769, %v770
    %v772 = vrot.slane %v771, 4
    %v773 = vadd.f32 %v771, %v772
    %v774 = vrot.slane %v773, 2
    %v775 = vadd.f32 %v773, %v774
    %v776 = vrot.slane %v775, 1
    %v777 = vadd.f32 %v775, %v776
    %v778 = vld [vmem:[#allocation2] sm:$0x1]
    %780 = vset.pattern.permute.xlu0 0
    %781 = vperm.xlu0 %780, %v778
    %v782 = vpop.permute.xlu0 %781
    %v784 = vlaneseq
    %v785 = vshrl.u32 %v784, 7
    %v786 = vsub.s32 0, %v785
    %v787 = vrot.slane %v782, %v786
    %v788 = vadd.f32 %v777, %v787
    %vm789 = vcmask 57344
    %790 = vst.msk [vmem:[#allocation3] sm:$0x1] %vm789, %v788
    // Predicated region
    $region30: #{tpu_custom_call.1} parent=1 // pred_check
      _
    $region31: #{tpu_custom_call.1} parent=1 // pred_check_branch
      %792 = sbr.rel (0) target = $region33
    $region32: #{tpu_custom_call.1} parent=1 // pred_region
      %s794 = ssub.s32 16, 16
      %795 = vsyncadd [#allocation4], %s794
      %s797 = sshll.u32 [#allocation3], 4
      %s798 = int_to_ptr.vmem [resolvable:$true] %s797
      %800 = dma.vmem_to_hbm [thread:$0]  %s798, 16, %s7, [#allocation4]
    $region33: #{tpu_custom_call.1} parent=1 // pred_fallthru
      _
    // Predicated region
    $region34: #{tpu_custom_call.1} parent=1 // pred_check
      _
    $region35: #{tpu_custom_call.1} parent=1 // pred_check_branch
      %802 = sbr.rel (0) target = $region37
    $region36: #{tpu_custom_call.1} parent=1 // pred_region
      %803 = dma.done [#allocation4], 16
    $region37: #{tpu_custom_call.1} parent=1 // pred_fallthru
      _
    %804 = vsyncpa [#allocation4], 1

</llo_original>
